<compile_context>
chip_gen: v6e
topology: v6e:2x2x1
jax: 0.10.0
libtpu: 0.0.40
codegen_flags: <defaults>
</compile_context>

<pallas_src>
import functools

import jax
import jax.numpy as jnp
from jax.experimental import pallas as pl
from jax.experimental.pallas import tpu as pltpu

IN_FEAT = 8          # np.prod(env.observation_space.shape) for LunarLander-v2
H1, H2, H3 = 128, 256, 512
N_ACTIONS = 4        # env.action_space.n for LunarLander-v2
OUT_PAD = 128        # lane-dense padded width of the final layer


def _device_kind():
    try:
        return jax.devices()[0].device_kind.lower()
    except Exception:
        return ""


_KIND = _device_kind()
# v6e / v7x have bf16 VPU/EUP paths; v5e (and older) do not -> keep f32 tanh there.
_BF16_EUP = ("v6" in _KIND) or ("v7" in _KIND)
_ACT_DTYPE = jnp.bfloat16 if _BF16_EUP else jnp.float32
_DEFAULT_TILE_M = 256 if _BF16_EUP else 128


def _mlp_kernel(x_ref,
                w1_ref, b1_ref,
                w2_ref, b2_ref,
                w3_ref, b3_ref,
                w4_ref, b4_ref,
                o_ref, *, act_dtype):
    # One batch tile per grid step. Matmuls run bf16 on the MXU with f32
    # accumulation; bias adds are f32 on the VPU; tanh runs on the EUP in
    # `act_dtype` (bf16 on v6e/v7x, f32 on v5e). Final store is lane-dense
    # (128 wide) and bf16 -> unmasked, half-width writeback.
    def act(a):
        return jnp.tanh(a.astype(act_dtype)).astype(jnp.bfloat16)

    h = act(jnp.dot(x_ref[...], w1_ref[...],
                    preferred_element_type=jnp.float32) + b1_ref[...])
    h = act(jnp.dot(h, w2_ref[...],
                    preferred_element_type=jnp.float32) + b2_ref[...])
    h = act(jnp.dot(h, w3_ref[...],
                    preferred_element_type=jnp.float32) + b3_ref[...])
    q = jnp.dot(h, w4_ref[...], preferred_element_type=jnp.float32) + b4_ref[...]
    o_ref[...] = q.astype(o_ref.dtype)


def prepare_params(params):
    """One-time weight prep, hoisted out of the forward path (call once after
    init / after every optimizer step): cast [in,out] weights to bf16 and pad
    the final layer to a 128-lane-dense output (extra columns are exact 0)."""
    w4 = jnp.pad(params["w4"], ((0, 0), (0, OUT_PAD - N_ACTIONS)))
    b4 = jnp.pad(params["b4"], ((0, 0), (0, OUT_PAD - N_ACTIONS)))
    return {
        "w1": params["w1"].astype(jnp.bfloat16), "b1": params["b1"].astype(jnp.float32),
        "w2": params["w2"].astype(jnp.bfloat16), "b2": params["b2"].astype(jnp.float32),
        "w3": params["w3"].astype(jnp.bfloat16), "b3": params["b3"].astype(jnp.float32),
        "w4": w4.astype(jnp.bfloat16),           "b4": b4.astype(jnp.float32),
    }


def mlp_forward(x, prepped, tile_m=None):
    """x: [B, IN_FEAT].  prepped: output of prepare_params().
    Returns [B, N_ACTIONS] float32 Q-values."""
    B = x.shape[0]
    x = x.astype(jnp.bfloat16)   # single wrapper-side cast; halves x DMA per tile

    if tile_m is None:
        tile_m = _DEFAULT_TILE_M

    # Batch tiling: pad batch to a 16-row sublane multiple (bf16 packing), then
    # to a tile multiple. Tiny act() batches -> single grid step; DQN replay
    # batches -> software-pipelined tiles with VMEM-resident weights.
    b_pad = max(16, -(-B // 16) * 16)
    tm = min(tile_m, b_pad)
    b_pad = -(-b_pad // tm) * tm
    if b_pad != B:
        x = jnp.pad(x, ((0, b_pad - B), (0, 0)))
    grid = (b_pad // tm,)

    def batch_tiled(n_cols):
        return pl.BlockSpec((tm, n_cols), lambda i: (i, 0))

    def resident(shape):
        # Same block for every grid step -> fetched once, stays in VMEM.
        # TODO(synk): pipeline_mode=pl.Buffered(1) would single-buffer these
        # resident blocks; skipped since VMEM is far from the limit at these sizes.
        return pl.BlockSpec(shape, lambda i: (0,) * len(shape))

    out = pl.pallas_call(
        functools.partial(_mlp_kernel, act_dtype=_ACT_DTYPE),
        out_shape=jax.ShapeDtypeStruct((b_pad, OUT_PAD), jnp.bfloat16),
        grid=grid,
        in_specs=[
            batch_tiled(IN_FEAT),
            resident(prepped["w1"].shape), resident(prepped["b1"].shape),
            resident(prepped["w2"].shape), resident(prepped["b2"].shape),
            resident(prepped["w3"].shape), resident(prepped["b3"].shape),
            resident(prepped["w4"].shape), resident(prepped["b4"].shape),
        ],
        out_specs=batch_tiled(OUT_PAD),
        compiler_params=pltpu.CompilerParams(
            dimension_semantics=("parallel",),                 # megacore-shardable batch axis
            vmem_limit_bytes=(8 << 20) if tm >= 256 else (4 << 20),
        ),
    )(x, prepped["w1"], prepped["b1"], prepped["w2"], prepped["b2"],
      prepped["w3"], prepped["b3"], prepped["w4"], prepped["b4"])

    return out[:B, :N_ACTIONS].astype(jnp.float32)


def init_params(key):
    """Deterministic synthetic init. Weights stored as [in, out] (= PyTorch W.T)."""
    dims = [(IN_FEAT, H1), (H1, H2), (H2, H3), (H3, N_ACTIONS)]
    params = {}
    keys = jax.random.split(key, 2 * len(dims))
    for i, (fan_in, fan_out) in enumerate(dims):
        bound = 1.0 / jnp.sqrt(fan_in)  # mimic PyTorch's default uniform init bound
        params[f"w{i+1}"] = jax.random.uniform(
            keys[2 * i], (fan_in, fan_out), jnp.float32, -bound, bound)
        # biases kept 2D [1, out] for clean TPU broadcasting in the kernel
        params[f"b{i+1}"] = jax.random.uniform(
            keys[2 * i + 1], (1, fan_out), jnp.float32, -bound, bound)
    return params


def reference_forward(x, params, act_dtype=_ACT_DTYPE):
    """Pure-JAX reference emulating the kernel's math: bf16-rounded x and
    weights, f32 accumulation, tanh computed in `act_dtype`."""
    def bf(a):
        return a.astype(jnp.bfloat16).astype(jnp.float32)

    def act(a):
        return bf(jnp.tanh(a.astype(act_dtype)))

    h = act(bf(x) @ bf(params["w1"]) + params["b1"])
    h = act(h @ bf(params["w2"]) + params["b2"])
    h = act(h @ bf(params["w3"]) + params["b3"])
    return h @ bf(params["w4"]) + params["b4"]


if __name__ == "__main__":
    key = jax.random.PRNGKey(0)
    pkey, xkey = jax.random.split(key)
    params = init_params(pkey)
    prepped = prepare_params(params)          # one-time prep, hoisted out of forward

    batch = 8
    x = jax.random.normal(xkey, (batch, IN_FEAT), jnp.float32)

    q_vals = mlp_forward(x, prepped)
    q_vals = jax.block_until_ready(q_vals)

    # correctness check against a pure-JAX reference of the same reduced-precision math
    ref = reference_forward(x, params)
    assert q_vals.shape == (batch, N_ACTIONS)
    assert jnp.allclose(q_vals, ref, atol=1e-2, rtol=1e-2), "mismatch vs reference"

    # equivalent of Network.act on the first observation (argmax over Q-values)
    _action = int(jnp.argmax(q_vals, axis=1)[0])

    print("KERNEL_OK")
</pallas_src>

<mosaic_0001>
module attributes {stable_mosaic.version = 11 : i64} {
  func.func @_mlp_kernel(%arg0: i32, %arg1: memref<16x8xbf16, #tpu.memory_space<vmem>>, %arg2: memref<8x128xbf16, #tpu.memory_space<vmem>>, %arg3: memref<1x128xf32, #tpu.memory_space<vmem>>, %arg4: memref<128x256xbf16, #tpu.memory_space<vmem>>, %arg5: memref<1x256xf32, #tpu.memory_space<vmem>>, %arg6: memref<256x512xbf16, #tpu.memory_space<vmem>>, %arg7: memref<1x512xf32, #tpu.memory_space<vmem>>, %arg8: memref<512x128xbf16, #tpu.memory_space<vmem>>, %arg9: memref<1x128xf32, #tpu.memory_space<vmem>>, %arg10: memref<16x128xbf16, #tpu.memory_space<vmem>>) attributes {dimension_semantics = [#tpu.dimension_semantics<parallel>], iteration_bounds = array<i64: 1>, scalar_prefetch = 0 : i64, scratch_operands = 0 : i64, tpu.core_type = #tpu.core_type<tc>, window_params = [{transform_indices = @transform_0, window_bounds = array<i64: 16, 8>}, {pipeline_mode = #tpu.pipeline_mode<synchronous>, transform_indices = @transform_1, window_bounds = array<i64: 8, 128>}, {pipeline_mode = #tpu.pipeline_mode<synchronous>, transform_indices = @transform_2, window_bounds = array<i64: 1, 128>}, {pipeline_mode = #tpu.pipeline_mode<synchronous>, transform_indices = @transform_3, window_bounds = array<i64: 128, 256>}, {pipeline_mode = #tpu.pipeline_mode<synchronous>, transform_indices = @transform_4, window_bounds = array<i64: 1, 256>}, {pipeline_mode = #tpu.pipeline_mode<synchronous>, transform_indices = @transform_5, window_bounds = array<i64: 256, 512>}, {pipeline_mode = #tpu.pipeline_mode<synchronous>, transform_indices = @transform_6, window_bounds = array<i64: 1, 512>}, {pipeline_mode = #tpu.pipeline_mode<synchronous>, transform_indices = @transform_7, window_bounds = array<i64: 512, 128>}, {pipeline_mode = #tpu.pipeline_mode<synchronous>, transform_indices = @transform_8, window_bounds = array<i64: 1, 128>}, {transform_indices = @transform_9, window_bounds = array<i64: 16, 128>}]} {
    %c0 = arith.constant 0 : index
    %c0_0 = arith.constant 0 : index
    %0 = vector.load %arg1[%c0, %c0_0] : memref<16x8xbf16, #tpu.memory_space<vmem>>, vector<16x8xbf16>
    %c0_1 = arith.constant 0 : index
    %c0_2 = arith.constant 0 : index
    %1 = vector.load %arg2[%c0_1, %c0_2] : memref<8x128xbf16, #tpu.memory_space<vmem>>, vector<8x128xbf16>
    %cst = arith.constant dense<0.000000e+00> : vector<16x128xf32>
    %2 = tpu.matmul %0, %1, %cst {dimension_numbers = #tpu.dot_dimension_numbers<[1], [0], [0], [1], [0, 0, 1, 1], [], []>} : vector<16x8xbf16>, vector<8x128xbf16>, vector<16x128xf32> -> vector<16x128xf32>
    %c0_3 = arith.constant 0 : index
    %c0_4 = arith.constant 0 : index
    %3 = vector.load %arg3[%c0_3, %c0_4] : memref<1x128xf32, #tpu.memory_space<vmem>>, vector<1x128xf32>
    %4 = vector.broadcast %3 : vector<1x128xf32> to vector<16x128xf32>
    %5 = arith.addf %2, %4 : vector<16x128xf32>
    %6 = math.tanh %5 : vector<16x128xf32>
    %7 = arith.truncf %6 : vector<16x128xf32> to vector<16x128xbf16>
    %c0_5 = arith.constant 0 : index
    %c0_6 = arith.constant 0 : index
    %8 = vector.load %arg4[%c0_5, %c0_6] : memref<128x256xbf16, #tpu.memory_space<vmem>>, vector<128x256xbf16>
    %cst_7 = arith.constant dense<0.000000e+00> : vector<16x256xf32>
    %9 = tpu.matmul %7, %8, %cst_7 {dimension_numbers = #tpu.dot_dimension_numbers<[1], [0], [0], [1], [0, 0, 1, 1], [], []>} : vector<16x128xbf16>, vector<128x256xbf16>, vector<16x256xf32> -> vector<16x256xf32>
    %c0_8 = arith.constant 0 : index
    %c0_9 = arith.constant 0 : index
    %10 = vector.load %arg5[%c0_8, %c0_9] : memref<1x256xf32, #tpu.memory_space<vmem>>, vector<1x256xf32>
    %11 = vector.broadcast %10 : vector<1x256xf32> to vector<16x256xf32>
    %12 = arith.addf %9, %11 : vector<16x256xf32>
    %13 = math.tanh %12 : vector<16x256xf32>
    %14 = arith.truncf %13 : vector<16x256xf32> to vector<16x256xbf16>
    %c0_10 = arith.constant 0 : index
    %c0_11 = arith.constant 0 : index
    %15 = vector.load %arg6[%c0_10, %c0_11] : memref<256x512xbf16, #tpu.memory_space<vmem>>, vector<256x512xbf16>
    %cst_12 = arith.constant dense<0.000000e+00> : vector<16x512xf32>
    %16 = tpu.matmul %14, %15, %cst_12 {dimension_numbers = #tpu.dot_dimension_numbers<[1], [0], [0], [1], [0, 0, 1, 1], [], []>} : vector<16x256xbf16>, vector<256x512xbf16>, vector<16x512xf32> -> vector<16x512xf32>
    %c0_13 = arith.constant 0 : index
    %c0_14 = arith.constant 0 : index
    %17 = vector.load %arg7[%c0_13, %c0_14] : memref<1x512xf32, #tpu.memory_space<vmem>>, vector<1x512xf32>
    %18 = vector.broadcast %17 : vector<1x512xf32> to vector<16x512xf32>
    %19 = arith.addf %16, %18 : vector<16x512xf32>
    %20 = math.tanh %19 : vector<16x512xf32>
    %21 = arith.truncf %20 : vector<16x512xf32> to vector<16x512xbf16>
    %c0_15 = arith.constant 0 : index
    %c0_16 = arith.constant 0 : index
    %22 = vector.load %arg8[%c0_15, %c0_16] : memref<512x128xbf16, #tpu.memory_space<vmem>>, vector<512x128xbf16>
    %cst_17 = arith.constant dense<0.000000e+00> : vector<16x128xf32>
    %23 = tpu.matmul %21, %22, %cst_17 {dimension_numbers = #tpu.dot_dimension_numbers<[1], [0], [0], [1], [0, 0, 1, 1], [], []>} : vector<16x512xbf16>, vector<512x128xbf16>, vector<16x128xf32> -> vector<16x128xf32>
    %c0_18 = arith.constant 0 : index
    %c0_19 = arith.constant 0 : index
    %24 = vector.load %arg9[%c0_18, %c0_19] : memref<1x128xf32, #tpu.memory_space<vmem>>, vector<1x128xf32>
    %25 = vector.broadcast %24 : vector<1x128xf32> to vector<16x128xf32>
    %26 = arith.addf %23, %25 : vector<16x128xf32>
    %27 = arith.truncf %26 : vector<16x128xf32> to vector<16x128xbf16>
    %c0_20 = arith.constant 0 : index
    %c0_21 = arith.constant 0 : index
    %28 = vector.load %arg10[%c0_20, %c0_21] : memref<16x128xbf16, #tpu.memory_space<vmem>>, vector<16x128xbf16>
    tpu.vector_store %arg10[%c0_20, %c0_21], %27 {strides = array<i32>} : memref<16x128xbf16, #tpu.memory_space<vmem>>, vector<16x128xbf16>,
    return
  }
  func.func @transform_0(%arg0: i32) -> (i32, i32) {
    %c0_i32 = arith.constant 0 : i32
    %c0_i32_0 = arith.constant 0 : i32
    return %arg0, %c0_i32 : i32, i32
  }
  func.func @transform_1(%arg0: i32) -> (i32, i32) {
    %c0_i32 = arith.constant 0 : i32
    %c0_i32_0 = arith.constant 0 : i32
    %c0_i32_1 = arith.constant 0 : i32
    return %c0_i32, %c0_i32_0 : i32, i32
  }
  func.func @transform_2(%arg0: i32) -> (i32, i32) {
    %c0_i32 = arith.constant 0 : i32
    %c0_i32_0 = arith.constant 0 : i32
    %c0_i32_1 = arith.constant 0 : i32
    return %c0_i32, %c0_i32_0 : i32, i32
  }
  func.func @transform_3(%arg0: i32) -> (i32, i32) {
    %c0_i32 = arith.constant 0 : i32
    %c0_i32_0 = arith.constant 0 : i32
    %c0_i32_1 = arith.constant 0 : i32
    return %c0_i32, %c0_i32_0 : i32, i32
  }
  func.func @transform_4(%arg0: i32) -> (i32, i32) {
    %c0_i32 = arith.constant 0 : i32
    %c0_i32_0 = arith.constant 0 : i32
    %c0_i32_1 = arith.constant 0 : i32
    return %c0_i32, %c0_i32_0 : i32, i32
  }
  func.func @transform_5(%arg0: i32) -> (i32, i32) {
    %c0_i32 = arith.constant 0 : i32
    %c0_i32_0 = arith.constant 0 : i32
    %c0_i32_1 = arith.constant 0 : i32
    return %c0_i32, %c0_i32_0 : i32, i32
  }
  func.func @transform_6(%arg0: i32) -> (i32, i32) {
    %c0_i32 = arith.constant 0 : i32
    %c0_i32_0 = arith.constant 0 : i32
    %c0_i32_1 = arith.constant 0 : i32
    return %c0_i32, %c0_i32_0 : i32, i32
  }
  func.func @transform_7(%arg0: i32) -> (i32, i32) {
    %c0_i32 = arith.constant 0 : i32
    %c0_i32_0 = arith.constant 0 : i32
    %c0_i32_1 = arith.constant 0 : i32
    return %c0_i32, %c0_i32_0 : i32, i32
  }
  func.func @transform_8(%arg0: i32) -> (i32, i32) {
    %c0_i32 = arith.constant 0 : i32
    %c0_i32_0 = arith.constant 0 : i32
    %c0_i32_1 = arith.constant 0 : i32
    return %c0_i32, %c0_i32_0 : i32, i32
  }
  func.func @transform_9(%arg0: i32) -> (i32, i32) {
    %c0_i32 = arith.constant 0 : i32
    %c0_i32_0 = arith.constant 0 : i32
    return %arg0, %c0_i32 : i32, i32
  }
}

</mosaic_0001>

<llo_original>
// kernel: tpu_custom_call.1
$region0: #{tpu_custom_call.1}
  #allocation0 [shape = 'u32[]', space=smem, size = 0x4, offset = 0x4, fixed_abs, tag = 'smem constant byte address 0x4 - core index']
  #allocation1 [shape = 'u32[144,128]{1,0:T(1,128)}', space=vmem, size = 0x12000, scoped, tag = 'internal scratch']
  %s0 = inlined_call_operand.vmem [shape: bf16[16,8], index: 0, kind: input, shape index: {}]
  %s1 = inlined_call_operand.vmem [shape: bf16[8,128], index: 1, kind: input, shape index: {}]
  %s2 = inlined_call_operand.vmem [shape: f32[1,128], index: 2, kind: input, shape index: {}]
  %s3 = inlined_call_operand.hbm [shape: bf16[128,256], index: 3, kind: input, shape index: {}]
  %s4 = inlined_call_operand.vmem [shape: f32[1,256], index: 4, kind: input, shape index: {}]
  %s5 = inlined_call_operand.hbm [shape: bf16[256,512], index: 5, kind: input, shape index: {}]
  %s6 = inlined_call_operand.vmem [shape: f32[1,512], index: 6, kind: input, shape index: {}]
  %s7 = inlined_call_operand.hbm [shape: bf16[512,128], index: 7, kind: input, shape index: {}]
  %s8 = inlined_call_operand.vmem [shape: f32[1,128], index: 8, kind: input, shape index: {}]
  %s9 = inlined_call_operand.hbm [shape: bf16[16,128], index: 9, kind: output, shape index: {}]
  %s10 = sld [smem:[#allocation0]]
  $region58: #{tpu_custom_call.1} parent=0
    _
  %s12 = ssub.s32 1, %s10
  %s13 = scalar_select 0, %s12, %s10
  $region1: #{tpu_custom_call.1} parent=0
    #allocation2 [shape = 'u8[65536]{0}', space=vmem, size = 0x10000, scoped, tag = 'input window, operand 3, single buffered']
    #allocation3 [shape = 's32[1]{0}', space=sflag, size = 0x4, scoped, tag = 'scoped memory for tpu_custom_call.1']
    #allocation4 [shape = 's32[1]{0}', space=sflag, size = 0x4, scoped, tag = 'scoped memory for tpu_custom_call.1']
    #allocation5 [shape = 'u8[262144]{0}', space=vmem, size = 0x40000, scoped, tag = 'input window, operand 5, single buffered']
    #allocation6 [shape = 's32[1]{0}', space=sflag, size = 0x4, scoped, tag = 'scoped memory for tpu_custom_call.1']
    #allocation7 [shape = 'u8[131072]{0}', space=vmem, size = 0x20000, scoped, tag = 'input window, operand 7, single buffered']
    #allocation8 [shape = 'u8[4096]{0}', space=vmem, size = 0x1000, scoped, tag = 'output window, operand 0, single buffered']
    %14 = vsyncpa [#allocation3], 0
    %15 = vsyncpa [#allocation6], 0
    %16 = vsyncpa [#allocation4], 0
    // Predicated region
    $region2: #{tpu_custom_call.1} parent=1 // pred_check
      _
    $region3: #{tpu_custom_call.1} parent=1 // pred_check_branch
      %18 = sbr.rel (0) target = $region5
    $region4: #{tpu_custom_call.1} parent=1 // pred_region
      _
    $region5: #{tpu_custom_call.1} parent=1 // pred_fallthru
      _
    // Predicated region
    $region6: #{tpu_custom_call.1} parent=1 // pred_check
      _
    $region7: #{tpu_custom_call.1} parent=1 // pred_check_branch
      %20 = sbr.rel (0) target = $region9
    $region8: #{tpu_custom_call.1} parent=1 // pred_region
      _
    $region9: #{tpu_custom_call.1} parent=1 // pred_fallthru
      _
    // Predicated region
    $region10: #{tpu_custom_call.1} parent=1 // pred_check
      _
    $region11: #{tpu_custom_call.1} parent=1 // pred_check_branch
      %22 = sbr.rel (0) target = $region13
    $region12: #{tpu_custom_call.1} parent=1 // pred_region
      _
    $region13: #{tpu_custom_call.1} parent=1 // pred_fallthru
      _
    // Predicated region
    $region14: #{tpu_custom_call.1} parent=1 // pred_check
      _
    $region15: #{tpu_custom_call.1} parent=1 // pred_check_branch
      %24 = sbr.rel (0) target = $region17
    $region16: #{tpu_custom_call.1} parent=1 // pred_region
      %s26 = ssub.s32 2048, 2048
      %27 = vsyncadd [#allocation3], %s26
      %s28 = sshll.u32 [#allocation2], 4
      %s29 = int_to_ptr.vmem [resolvable:$true] %s28
      %34 = dma.hbm_to_vmem [thread:$0]  %s3, 2048, %s29, [#allocation3], 128, 128, 8
    $region17: #{tpu_custom_call.1} parent=1 // pred_fallthru
      _
    // Predicated region
    $region18: #{tpu_custom_call.1} parent=1 // pred_check
      _
    $region19: #{tpu_custom_call.1} parent=1 // pred_check_branch
      %36 = sbr.rel (0) target = $region21
    $region20: #{tpu_custom_call.1} parent=1 // pred_region
      _
    $region21: #{tpu_custom_call.1} parent=1 // pred_fallthru
      _
    // Predicated region
    $region22: #{tpu_custom_call.1} parent=1 // pred_check
      _
    $region23: #{tpu_custom_call.1} parent=1 // pred_check_branch
      %38 = sbr.rel (0) target = $region25
    $region24: #{tpu_custom_call.1} parent=1 // pred_region
      %s40 = ssub.s32 8192, 8192
      %41 = vsyncadd [#allocation6], %s40
      %s42 = sshll.u32 [#allocation5], 4
      %s43 = int_to_ptr.vmem [resolvable:$true] %s42
      %48 = dma.hbm_to_vmem [thread:$0]  %s5, 8192, %s43, [#allocation6], 256, 256, 16
    $region25: #{tpu_custom_call.1} parent=1 // pred_fallthru
      _
    // Predicated region
    $region26: #{tpu_custom_call.1} parent=1 // pred_check
      _
    $region27: #{tpu_custom_call.1} parent=1 // pred_check_branch
      %50 = sbr.rel (0) target = $region29
    $region28: #{tpu_custom_call.1} parent=1 // pred_region
      _
    $region29: #{tpu_custom_call.1} parent=1 // pred_fallthru
      _
    // Predicated region
    $region30: #{tpu_custom_call.1} parent=1 // pred_check
      _
    $region31: #{tpu_custom_call.1} parent=1 // pred_check_branch
      %52 = sbr.rel (0) target = $region33
    $region32: #{tpu_custom_call.1} parent=1 // pred_region
      %s54 = ssub.s32 4096, 4096
      %55 = vsyncadd [#allocation6], %s54
      %s56 = sshll.u32 [#allocation7], 4
      %s57 = int_to_ptr.vmem [resolvable:$true] %s56
      %62 = dma.hbm_to_vmem [thread:$0]  %s7, 4096, %s57, [#allocation6], 64, 64, 4
    $region33: #{tpu_custom_call.1} parent=1 // pred_fallthru
      _
    // Predicated region
    $region34: #{tpu_custom_call.1} parent=1 // pred_check
      _
    $region35: #{tpu_custom_call.1} parent=1 // pred_check_branch
      %64 = sbr.rel (0) target = $region37
    $region36: #{tpu_custom_call.1} parent=1 // pred_region
      _
    $region37: #{tpu_custom_call.1} parent=1 // pred_fallthru
      _
    // Predicated region
    $region38: #{tpu_custom_call.1} parent=1 // pred_check
      _
    $region39: #{tpu_custom_call.1} parent=1 // pred_check_branch
      %66 = sbr.rel (0) target = $region41
    $region40: #{tpu_custom_call.1} parent=1 // pred_region
      %67 = dma.done [#allocation3], 2048
    $region41: #{tpu_custom_call.1} parent=1 // pred_fallthru
      _
    // Predicated region
    $region42: #{tpu_custom_call.1} parent=1 // pred_check
      _
    $region43: #{tpu_custom_call.1} parent=1 // pred_check_branch
      %69 = sbr.rel (0) target = $region45
    $region44: #{tpu_custom_call.1} parent=1 // pred_region
      %70 = dma.done [#allocation6], 8192
    $region45: #{tpu_custom_call.1} parent=1 // pred_fallthru
      _
    // Predicated region
    $region46: #{tpu_custom_call.1} parent=1 // pred_check
      _
    $region47: #{tpu_custom_call.1} parent=1 // pred_check_branch
      %72 = sbr.rel (0) target = $region49
    $region48: #{tpu_custom_call.1} parent=1 // pred_region
      %73 = dma.done [#allocation6], 4096
    $region49: #{tpu_custom_call.1} parent=1 // pred_fallthru
      _
    %v75 = vld [vmem:[%s0] sm:$0xf]
    %v76 = vld [vmem:[%s0 + $0x4] sm:$0xf]
    %v77 = vld [vmem:[%s1] sm:$0xf]
    %v78 = vld [vmem:[%s2] sm:$0x1]
    %v80 = vlaneseq
    %v81 = vshrl.u32 %v80, 7
    %v82 = vsub.s32 0, %v81
    %v83 = vrot.slane %v78, %v82
    %v87 = vunpack.c.l.b16 %v75
    %v88 = vunpack.c.l.b16 %v76
    %v89 = vpack.c.b16 %v88, %v87
    %vm90 = vcmask 64512
    %v92 = vsel %vm90, %v89, 0
    %vm94 = vcmask 1043456
    %v96 = vsel %vm94, %v77, 0
    %98 = vmatprep.subr.bf16.mxu0 0
    %99 = vmatpush1.bf16.msra.mxu0 0
    %100 = vmatprep.subr.bf16.mxu0 0
    %101 = vmatpush1.bf16.msra.mxu0 0
    %102 = vmatprep.subr.bf16.mxu0 0
    %103 = vmatpush1.bf16.msra.mxu0 0
    %104 = vmatprep.subr.bf16.mxu0 0
    %105 = vmatpush1.bf16.msra.mxu0 0
    %106 = vmatprep.subr.bf16.mxu0 0
    %107 = vmatpush1.bf16.msra.mxu0 0
    %108 = vmatprep.subr.bf16.mxu0 0
    %109 = vmatpush1.bf16.msra.mxu0 0
    %110 = vmatprep.subr.bf16.mxu0 0
    %111 = vmatpush1.bf16.msra.mxu0 0
    %112 = vmatprep.subr.bf16.mxu0 0
    %113 = vmatpush1.bf16.msra.mxu0 %v96
    %114 = vmatprep.subr.bf16.mxu0 0
    %115 = vmatpush2.bf16.msra.mxu0 0
    %116 = vmatprep.subr.bf16.mxu0 0
    %117 = vmatpush2.bf16.msra.mxu0 0
    %118 = vmatprep.subr.bf16.mxu0 0
    %119 = vmatpush2.bf16.msra.mxu0 0
    %120 = vmatprep.subr.bf16.mxu0 0
    %121 = vmatpush2.bf16.msra.mxu0 0
    %122 = vmatprep.subr.bf16.mxu0 0
    %123 = vmatpush2.bf16.msra.mxu0 0
    %124 = vmatprep.subr.bf16.mxu0 0
    %125 = vmatpush2.bf16.msra.mxu0 0
    %126 = vmatprep.subr.bf16.mxu0 0
    %127 = vmatpush2.bf16.msra.mxu0 0
    %128 = vmatprep.subr.bf16.mxu0 0
    %129 = vmatpush2.bf16.msra.mxu0 0
    %130 = vmatprep.mubr.bf16.mxu0 0
    %131 = vmatmul.mubr.bf16.gmra.mxu0 %v92
    %v132 = vpop.f32.mrf.mxu0
    %v133 = vadd.f32 %v83, %v132
    %v134 = vpop.f32.mrf.mxu0
    %v135 = vpop.f32.mrf.mxu0
    %v136 = vadd.f32 %v83, %v135
    %v137 = vpop.f32.mrf.mxu0
    %138 = vdwg.mxu0
    %v139 = vtanh.pop %v133
    %v140 = vtanh.pop %v136
    %v141 = vpack.c.bf16 %v140, %v139
    %v142 = vld [vmem:[#allocation2] sm:$0xff]
    %v143 = vld [vmem:[#allocation2 + $0x8] sm:$0xff]
    %v144 = vld [vmem:[#allocation2 + $0x10] sm:$0xff]
    %v145 = vld [vmem:[#allocation2 + $0x18] sm:$0xff]
    %v146 = vld [vmem:[#allocation2 + $0x20] sm:$0xff]
    %v147 = vld [vmem:[#allocation2 + $0x28] sm:$0xff]
    %v148 = vld [vmem:[#allocation2 + $0x30] sm:$0xff]
    %v149 = vld [vmem:[#allocation2 + $0x38] sm:$0xff]
    %v150 = vld [vmem:[#allocation2 + $0x40] sm:$0xff]
    %v151 = vld [vmem:[#allocation2 + $0x48] sm:$0xff]
    %v152 = vld [vmem:[#allocation2 + $0x50] sm:$0xff]
    %v153 = vld [vmem:[#allocation2 + $0x58] sm:$0xff]
    %v154 = vld [vmem:[#allocation2 + $0x60] sm:$0xff]
    %v155 = vld [vmem:[#allocation2 + $0x68] sm:$0xff]
    %v156 = vld [vmem:[#allocation2 + $0x70] sm:$0xff]
    %v157 = vld [vmem:[#allocation2 + $0x78] sm:$0xff]
    %v158 = vld [vmem:[%s4] sm:$0x3]
    %v160 = vlaneseq
    %v161 = vshrl.u32 %v160, 7
    %v162 = vsub.s32 0, %v161
    %v163 = vrot.slane %v158, %v162
    %v164 = vlaneseq
    %v165 = vshrl.u32 %v164, 7
    %v166 = vsub.s32 1, %v165
    %v167 = vrot.slane %v158, %v166
    %v186 = vunpack.c.l.b16 %v142
    %v187 = vunpack.c.h.b16 %v142
    %v188 = vunpack.c.l.b16 %v143
    %v189 = vunpack.c.h.b16 %v143
    %v190 = vunpack.c.l.b16 %v144
    %v191 = vunpack.c.h.b16 %v144
    %v192 = vunpack.c.l.b16 %v145
    %v193 = vunpack.c.h.b16 %v145
    %v194 = vunpack.c.l.b16 %v146
    %v195 = vunpack.c.h.b16 %v146
    %v196 = vunpack.c.l.b16 %v147
    %v197 = vunpack.c.h.b16 %v147
    %v198 = vunpack.c.l.b16 %v148
    %v199 = vunpack.c.h.b16 %v148
    %v200 = vunpack.c.l.b16 %v149
    %v201 = vunpack.c.h.b16 %v149
    %v202 = vunpack.c.l.b16 %v150
    %v203 = vunpack.c.h.b16 %v150
    %v204 = vunpack.c.l.b16 %v151
    %v205 = vunpack.c.h.b16 %v151
    %v206 = vunpack.c.l.b16 %v152
    %v207 = vunpack.c.h.b16 %v152
    %v208 = vunpack.c.l.b16 %v153
    %v209 = vunpack.c.h.b16 %v153
    %v210 = vunpack.c.l.b16 %v154
    %v211 = vunpack.c.h.b16 %v154
    %v212 = vunpack.c.l.b16 %v155
    %v213 = vunpack.c.h.b16 %v155
    %v214 = vunpack.c.l.b16 %v156
    %v215 = vunpack.c.h.b16 %v156
    %v216 = vunpack.c.l.b16 %v157
    %v217 = vunpack.c.h.b16 %v157
    %v218 = vpack.c.b16 %v188, %v186
    %v219 = vpack.c.b16 %v189, %v187
    %v220 = vpack.c.b16 %v192, %v190
    %v221 = vpack.c.b16 %v193, %v191
    %v222 = vpack.c.b16 %v196, %v194
    %v223 = vpack.c.b16 %v197, %v195
    %v224 = vpack.c.b16 %v200, %v198
    %v225 = vpack.c.b16 %v201, %v199
    %v226 = vpack.c.b16 %v204, %v202
    %v227 = vpack.c.b16 %v205, %v203
    %v228 = vpack.c.b16 %v208, %v206
    %v229 = vpack.c.b16 %v209, %v207
    %v230 = vpack.c.b16 %v212, %v210
    %v231 = vpack.c.b16 %v213, %v211
    %v232 = vpack.c.b16 %v216, %v214
    %v233 = vpack.c.b16 %v217, %v215
    %250 = vmatprep.subr.bf16.mxu0 %v233
    %251 = vmatpush1.bf16.msra.mxu0 %v232
    %252 = vmatprep.subr.bf16.mxu0 %v231
    %253 = vmatpush1.bf16.msra.mxu0 %v230
    %254 = vmatprep.subr.bf16.mxu0 %v229
    %255 = vmatpush1.bf16.msra.mxu0 %v228
    %256 = vmatprep.subr.bf16.mxu0 %v227
    %257 = vmatpush1.bf16.msra.mxu0 %v226
    %258 = vmatprep.subr.bf16.mxu0 %v225
    %259 = vmatpush1.bf16.msra.mxu0 %v224
    %260 = vmatprep.subr.bf16.mxu0 %v223
    %261 = vmatpush1.bf16.msra.mxu0 %v222
    %262 = vmatprep.subr.bf16.mxu0 %v221
    %263 = vmatpush1.bf16.msra.mxu0 %v220
    %264 = vmatprep.subr.bf16.mxu0 %v219
    %265 = vmatpush1.bf16.msra.mxu0 %v218
    %266 = vmatprep.subr.bf16.mxu0 0
    %267 = vmatpush2.bf16.msra.mxu0 0
    %268 = vmatprep.subr.bf16.mxu0 0
    %269 = vmatpush2.bf16.msra.mxu0 0
    %270 = vmatprep.subr.bf16.mxu0 0
    %271 = vmatpush2.bf16.msra.mxu0 0
    %272 = vmatprep.subr.bf16.mxu0 0
    %273 = vmatpush2.bf16.msra.mxu0 0
    %274 = vmatprep.subr.bf16.mxu0 0
    %275 = vmatpush2.bf16.msra.mxu0 0
    %276 = vmatprep.subr.bf16.mxu0 0
    %277 = vmatpush2.bf16.msra.mxu0 0
    %278 = vmatprep.subr.bf16.mxu0 0
    %279 = vmatpush2.bf16.msra.mxu0 0
    %280 = vmatprep.subr.bf16.mxu0 0
    %281 = vmatpush2.bf16.msra.mxu0 0
    %282 = vmatprep.mubr.bf16.mxu0 0
    %283 = vmatmul.mubr.bf16.gmra.mxu0 %v141
    %v284 = vpop.f32.mrf.mxu0
    %v285 = vadd.f32 %v163, %v284
    %v286 = vpop.f32.mrf.mxu0
    %v287 = vadd.f32 %v167, %v286
    %v288 = vpop.f32.mrf.mxu0
    %v289 = vadd.f32 %v163, %v288
    %v290 = vpop.f32.mrf.mxu0
    %v291 = vadd.f32 %v167, %v290
    %292 = vdwg.mxu0
    %v293 = vtanh.pop %v285
    %v294 = vtanh.pop %v287
    %v295 = vtanh.pop %v289
    %v296 = vtanh.pop %v291
    %v297 = vpack.c.bf16 %v295, %v293
    %v298 = vpack.c.bf16 %v296, %v294
    %v299 = vld [vmem:[#allocation5] sm:$0xff]
    %v300 = vld [vmem:[#allocation5 + $0x8] sm:$0xff]
    %v301 = vld [vmem:[#allocation5 + $0x10] sm:$0xff]
    %v302 = vld [vmem:[#allocation5 + $0x18] sm:$0xff]
    %v303 = vld [vmem:[#allocation5 + $0x20] sm:$0xff]
    %v304 = vld [vmem:[#allocation5 + $0x28] sm:$0xff]
    %v305 = vld [vmem:[#allocation5 + $0x30] sm:$0xff]
    %v306 = vld [vmem:[#allocation5 + $0x38] sm:$0xff]
    %v307 = vld [vmem:[#allocation5 + $0x40] sm:$0xff]
    %v308 = vld [vmem:[#allocation5 + $0x48] sm:$0xff]
    %v309 = vld [vmem:[#allocation5 + $0x50] sm:$0xff]
    %v310 = vld [vmem:[#allocation5 + $0x58] sm:$0xff]
    %v311 = vld [vmem:[#allocation5 + $0x60] sm:$0xff]
    %v312 = vld [vmem:[#allocation5 + $0x68] sm:$0xff]
    %v313 = vld [vmem:[#allocation5 + $0x70] sm:$0xff]
    %v314 = vld [vmem:[#allocation5 + $0x78] sm:$0xff]
    %v315 = vld [vmem:[#allocation5 + $0x80] sm:$0xff]
    %v316 = vld [vmem:[#allocation5 + $0x88] sm:$0xff]
    %v317 = vld [vmem:[#allocation5 + $0x90] sm:$0xff]
    %v318 = vld [vmem:[#allocation5 + $0x98] sm:$0xff]
    %v319 = vld [vmem:[#allocation5 + $0xa0] sm:$0xff]
    %v320 = vld [vmem:[#allocation5 + $0xa8] sm:$0xff]
    %v321 = vld [vmem:[#allocation5 + $0xb0] sm:$0xff]
    %v322 = vld [vmem:[#allocation5 + $0xb8] sm:$0xff]
    %v323 = vld [vmem:[#allocation5 + $0xc0] sm:$0xff]
    %v324 = vld [vmem:[#allocation5 + $0xc8] sm:$0xff]
    %v325 = vld [vmem:[#allocation5 + $0xd0] sm:$0xff]
    %v326 = vld [vmem:[#allocation5 + $0xd8] sm:$0xff]
    %v327 = vld [vmem:[#allocation5 + $0xe0] sm:$0xff]
    %v328 = vld [vmem:[#allocation5 + $0xe8] sm:$0xff]
    %v329 = vld [vmem:[#allocation5 + $0xf0] sm:$0xff]
    %v330 = vld [vmem:[#allocation5 + $0xf8] sm:$0xff]
    %v331 = vld [vmem:[#allocation5 + $0x100] sm:$0xff]
    %v332 = vld [vmem:[#allocation5 + $0x108] sm:$0xff]
    %v333 = vld [vmem:[#allocation5 + $0x110] sm:$0xff]
    %v334 = vld [vmem:[#allocation5 + $0x118] sm:$0xff]
    %v335 = vld [vmem:[#allocation5 + $0x120] sm:$0xff]
    %v336 = vld [vmem:[#allocation5 + $0x128] sm:$0xff]
    %v337 = vld [vmem:[#allocation5 + $0x130] sm:$0xff]
    %v338 = vld [vmem:[#allocation5 + $0x138] sm:$0xff]
    %v339 = vld [vmem:[#allocation5 + $0x140] sm:$0xff]
    %v340 = vld [vmem:[#allocation5 + $0x148] sm:$0xff]
    %v341 = vld [vmem:[#allocation5 + $0x150] sm:$0xff]
    %v342 = vld [vmem:[#allocation5 + $0x158] sm:$0xff]
    %v343 = vld [vmem:[#allocation5 + $0x160] sm:$0xff]
    %v344 = vld [vmem:[#allocation5 + $0x168] sm:$0xff]
    %v345 = vld [vmem:[#allocation5 + $0x170] sm:$0xff]
    %v346 = vld [vmem:[#allocation5 + $0x178] sm:$0xff]
    %v347 = vld [vmem:[#allocation5 + $0x180] sm:$0xff]
    %v348 = vld [vmem:[#allocation5 + $0x188] sm:$0xff]
    %v349 = vld [vmem:[#allocation5 + $0x190] sm:$0xff]
    %v350 = vld [vmem:[#allocation5 + $0x198] sm:$0xff]
    %v351 = vld [vmem:[#allocation5 + $0x1a0] sm:$0xff]
    %v352 = vld [vmem:[#allocation5 + $0x1a8] sm:$0xff]
    %v353 = vld [vmem:[#allocation5 + $0x1b0] sm:$0xff]
    %v354 = vld [vmem:[#allocation5 + $0x1b8] sm:$0xff]
    %v355 = vld [vmem:[#allocation5 + $0x1c0] sm:$0xff]
    %v356 = vld [vmem:[#allocation5 + $0x1c8] sm:$0xff]
    %v357 = vld [vmem:[#allocation5 + $0x1d0] sm:$0xff]
    %v358 = vld [vmem:[#allocation5 + $0x1d8] sm:$0xff]
    %v359 = vld [vmem:[#allocation5 + $0x1e0] sm:$0xff]
    %v360 = vld [vmem:[#allocation5 + $0x1e8] sm:$0xff]
    %v361 = vld [vmem:[#allocation5 + $0x1f0] sm:$0xff]
    %v362 = vld [vmem:[#allocation5 + $0x1f8] sm:$0xff]
    %v363 = vld [vmem:[%s6] sm:$0xf]
    %v365 = vlaneseq
    %v366 = vshrl.u32 %v365, 7
    %v367 = vsub.s32 0, %v366
    %v368 = vrot.slane %v363, %v367
    %v369 = vlaneseq
    %v370 = vshrl.u32 %v369, 7
    %v371 = vsub.s32 1, %v370
    %v372 = vrot.slane %v363, %v371
    %v373 = vlaneseq
    %v374 = vshrl.u32 %v373, 7
    %v375 = vsub.s32 2, %v374
    %v376 = vrot.slane %v363, %v375
    %v377 = vlaneseq
    %v378 = vshrl.u32 %v377, 7
    %v379 = vsub.s32 3, %v378
    %v380 = vrot.slane %v363, %v379
    %v449 = vunpack.c.l.b16 %v299
    %v450 = vunpack.c.h.b16 %v299
    %v451 = vunpack.c.l.b16 %v300
    %v452 = vunpack.c.h.b16 %v300
    %v453 = vunpack.c.l.b16 %v301
    %v454 = vunpack.c.h.b16 %v301
    %v455 = vunpack.c.l.b16 %v302
    %v456 = vunpack.c.h.b16 %v302
    %v457 = vunpack.c.l.b16 %v303
    %v458 = vunpack.c.h.b16 %v303
    %v459 = vunpack.c.l.b16 %v304
    %v460 = vunpack.c.h.b16 %v304
    %v461 = vunpack.c.l.b16 %v305
    %v462 = vunpack.c.h.b16 %v305
    %v463 = vunpack.c.l.b16 %v306
    %v464 = vunpack.c.h.b16 %v306
    %v465 = vunpack.c.l.b16 %v307
    %v466 = vunpack.c.h.b16 %v307
    %v467 = vunpack.c.l.b16 %v308
    %v468 = vunpack.c.h.b16 %v308
    %v469 = vunpack.c.l.b16 %v309
    %v470 = vunpack.c.h.b16 %v309
    %v471 = vunpack.c.l.b16 %v310
    %v472 = vunpack.c.h.b16 %v310
    %v473 = vunpack.c.l.b16 %v311
    %v474 = vunpack.c.h.b16 %v311
    %v475 = vunpack.c.l.b16 %v312
    %v476 = vunpack.c.h.b16 %v312
    %v477 = vunpack.c.l.b16 %v313
    %v478 = vunpack.c.h.b16 %v313
    %v479 = vunpack.c.l.b16 %v314
    %v480 = vunpack.c.h.b16 %v314
    %v481 = vunpack.c.l.b16 %v315
    %v482 = vunpack.c.h.b16 %v315
    %v483 = vunpack.c.l.b16 %v316
    %v484 = vunpack.c.h.b16 %v316
    %v485 = vunpack.c.l.b16 %v317
    %v486 = vunpack.c.h.b16 %v317
    %v487 = vunpack.c.l.b16 %v318
    %v488 = vunpack.c.h.b16 %v318
    %v489 = vunpack.c.l.b16 %v319
    %v490 = vunpack.c.h.b16 %v319
    %v491 = vunpack.c.l.b16 %v320
    %v492 = vunpack.c.h.b16 %v320
    %v493 = vunpack.c.l.b16 %v321
    %v494 = vunpack.c.h.b16 %v321
    %v495 = vunpack.c.l.b16 %v322
    %v496 = vunpack.c.h.b16 %v322
    %v497 = vunpack.c.l.b16 %v323
    %v498 = vunpack.c.h.b16 %v323
    %v499 = vunpack.c.l.b16 %v324
    %v500 = vunpack.c.h.b16 %v324
    %v501 = vunpack.c.l.b16 %v325
    %v502 = vunpack.c.h.b16 %v325
    %v503 = vunpack.c.l.b16 %v326
    %v504 = vunpack.c.h.b16 %v326
    %v505 = vunpack.c.l.b16 %v327
    %v506 = vunpack.c.h.b16 %v327
    %v507 = vunpack.c.l.b16 %v328
    %v508 = vunpack.c.h.b16 %v328
    %v509 = vunpack.c.l.b16 %v329
    %v510 = vunpack.c.h.b16 %v329
    %v511 = vunpack.c.l.b16 %v330
    %v512 = vunpack.c.h.b16 %v330
    %v513 = vunpack.c.l.b16 %v331
    %v514 = vunpack.c.h.b16 %v331
    %v515 = vunpack.c.l.b16 %v332
    %v516 = vunpack.c.h.b16 %v332
    %v517 = vunpack.c.l.b16 %v333
    %v518 = vunpack.c.h.b16 %v333
    %v519 = vunpack.c.l.b16 %v334
    %v520 = vunpack.c.h.b16 %v334
    %v521 = vunpack.c.l.b16 %v335
    %v522 = vunpack.c.h.b16 %v335
    %v523 = vunpack.c.l.b16 %v336
    %v524 = vunpack.c.h.b16 %v336
    %v525 = vunpack.c.l.b16 %v337
    %v526 = vunpack.c.h.b16 %v337
    %v527 = vunpack.c.l.b16 %v338
    %v528 = vunpack.c.h.b16 %v338
    %v529 = vunpack.c.l.b16 %v339
    %v530 = vunpack.c.h.b16 %v339
    %v531 = vunpack.c.l.b16 %v340
    %v532 = vunpack.c.h.b16 %v340
    %v533 = vunpack.c.l.b16 %v341
    %v534 = vunpack.c.h.b16 %v341
    %v535 = vunpack.c.l.b16 %v342
    %v536 = vunpack.c.h.b16 %v342
    %v537 = vunpack.c.l.b16 %v343
    %v538 = vunpack.c.h.b16 %v343
    %v539 = vunpack.c.l.b16 %v344
    %v540 = vunpack.c.h.b16 %v344
    %v541 = vunpack.c.l.b16 %v345
    %v542 = vunpack.c.h.b16 %v345
    %v543 = vunpack.c.l.b16 %v346
    %v544 = vunpack.c.h.b16 %v346
    %v545 = vunpack.c.l.b16 %v347
    %v546 = vunpack.c.h.b16 %v347
    %v547 = vunpack.c.l.b16 %v348
    %v548 = vunpack.c.h.b16 %v348
    %v549 = vunpack.c.l.b16 %v349
    %v550 = vunpack.c.h.b16 %v349
    %v551 = vunpack.c.l.b16 %v350
    %v552 = vunpack.c.h.b16 %v350
    %v553 = vunpack.c.l.b16 %v351
    %v554 = vunpack.c.h.b16 %v351
    %v555 = vunpack.c.l.b16 %v352
    %v556 = vunpack.c.h.b16 %v352
    %v557 = vunpack.c.l.b16 %v353
    %v558 = vunpack.c.h.b16 %v353
    %v559 = vunpack.c.l.b16 %v354
    %v560 = vunpack.c.h.b16 %v354
    %v561 = vunpack.c.l.b16 %v355
    %v562 = vunpack.c.h.b16 %v355
    %v563 = vunpack.c.l.b16 %v356
    %v564 = vunpack.c.h.b16 %v356
    %v565 = vunpack.c.l.b16 %v357
    %v566 = vunpack.c.h.b16 %v357
    %v567 = vunpack.c.l.b16 %v358
    %v568 = vunpack.c.h.b16 %v358
    %v569 = vunpack.c.l.b16 %v359
    %v570 = vunpack.c.h.b16 %v359
    %v571 = vunpack.c.l.b16 %v360
    %v572 = vunpack.c.h.b16 %v360
    %v573 = vunpack.c.l.b16 %v361
    %v574 = vunpack.c.h.b16 %v361
    %v575 = vunpack.c.l.b16 %v362
    %v576 = vunpack.c.h.b16 %v362
    %v577 = vpack.c.b16 %v453, %v449
    %v578 = vpack.c.b16 %v454, %v450
    %v579 = vpack.c.b16 %v455, %v451
    %v580 = vpack.c.b16 %v456, %v452
    %v581 = vpack.c.b16 %v461, %v457
    %v582 = vpack.c.b16 %v462, %v458
    %v583 = vpack.c.b16 %v463, %v459
    %v584 = vpack.c.b16 %v464, %v460
    %v585 = vpack.c.b16 %v469, %v465
    %v586 = vpack.c.b16 %v470, %v466
    %v587 = vpack.c.b16 %v471, %v467
    %v588 = vpack.c.b16 %v472, %v468
    %v589 = vpack.c.b16 %v477, %v473
    %v590 = vpack.c.b16 %v478, %v474
    %v591 = vpack.c.b16 %v479, %v475
    %v592 = vpack.c.b16 %v480, %v476
    %v593 = vpack.c.b16 %v485, %v481
    %v594 = vpack.c.b16 %v486, %v482
    %v595 = vpack.c.b16 %v487, %v483
    %v596 = vpack.c.b16 %v488, %v484
    %v597 = vpack.c.b16 %v493, %v489
    %v598 = vpack.c.b16 %v494, %v490
    %v599 = vpack.c.b16 %v495, %v491
    %v600 = vpack.c.b16 %v496, %v492
    %v601 = vpack.c.b16 %v501, %v497
    %v602 = vpack.c.b16 %v502, %v498
    %v603 = vpack.c.b16 %v503, %v499
    %v604 = vpack.c.b16 %v504, %v500
    %v605 = vpack.c.b16 %v509, %v505
    %v606 = vpack.c.b16 %v510, %v506
    %v607 = vpack.c.b16 %v511, %v507
    %v608 = vpack.c.b16 %v512, %v508
    %v609 = vpack.c.b16 %v517, %v513
    %v610 = vpack.c.b16 %v518, %v514
    %v611 = vpack.c.b16 %v519, %v515
    %v612 = vpack.c.b16 %v520, %v516
    %v613 = vpack.c.b16 %v525, %v521
    %v614 = vpack.c.b16 %v526, %v522
    %v615 = vpack.c.b16 %v527, %v523
    %v616 = vpack.c.b16 %v528, %v524
    %v617 = vpack.c.b16 %v533, %v529
    %v618 = vpack.c.b16 %v534, %v530
    %v619 = vpack.c.b16 %v535, %v531
    %v620 = vpack.c.b16 %v536, %v532
    %v621 = vpack.c.b16 %v541, %v537
    %v622 = vpack.c.b16 %v542, %v538
    %v623 = vpack.c.b16 %v543, %v539
    %v624 = vpack.c.b16 %v544, %v540
    %v625 = vpack.c.b16 %v549, %v545
    %v626 = vpack.c.b16 %v550, %v546
    %v627 = vpack.c.b16 %v551, %v547
    %v628 = vpack.c.b16 %v552, %v548
    %v629 = vpack.c.b16 %v557, %v553
    %v630 = vpack.c.b16 %v558, %v554
    %v631 = vpack.c.b16 %v559, %v555
    %v632 = vpack.c.b16 %v560, %v556
    %v633 = vpack.c.b16 %v565, %v561
    %v634 = vpack.c.b16 %v566, %v562
    %v635 = vpack.c.b16 %v567, %v563
    %v636 = vpack.c.b16 %v568, %v564
    %v637 = vpack.c.b16 %v573, %v569
    %v638 = vpack.c.b16 %v574, %v570
    %v639 = vpack.c.b16 %v575, %v571
    %v640 = vpack.c.b16 %v576, %v572
    %705 = vmatprep.subr.bf16.mxu0 %v606
    %706 = vmatpush1.bf16.msra.mxu0 %v605
    %707 = vmatprep.subr.bf16.mxu0 %v602
    %708 = vmatpush1.bf16.msra.mxu0 %v601
    %709 = vmatprep.subr.bf16.mxu0 %v598
    %710 = vmatpush1.bf16.msra.mxu0 %v597
    %711 = vmatprep.subr.bf16.mxu0 %v594
    %712 = vmatpush1.bf16.msra.mxu0 %v593
    %713 = vmatprep.subr.bf16.mxu0 %v590
    %714 = vmatpush1.bf16.msra.mxu0 %v589
    %715 = vmatprep.subr.bf16.mxu0 %v586
    %716 = vmatpush1.bf16.msra.mxu0 %v585
    %717 = vmatprep.subr.bf16.mxu0 %v582
    %718 = vmatpush1.bf16.msra.mxu0 %v581
    %719 = vmatprep.subr.bf16.mxu0 %v578
    %720 = vmatpush1.bf16.msra.mxu0 %v577
    %721 = vmatprep.subr.bf16.mxu0 %v638
    %722 = vmatpush2.bf16.msra.mxu0 %v637
    %723 = vmatprep.subr.bf16.mxu0 %v634
    %724 = vmatpush2.bf16.msra.mxu0 %v633
    %725 = vmatprep.subr.bf16.mxu0 %v630
    %726 = vmatpush2.bf16.msra.mxu0 %v629
    %727 = vmatprep.subr.bf16.mxu0 %v626
    %728 = vmatpush2.bf16.msra.mxu0 %v625
    %729 = vmatprep.subr.bf16.mxu0 %v622
    %730 = vmatpush2.bf16.msra.mxu0 %v621
    %731 = vmatprep.subr.bf16.mxu0 %v618
    %732 = vmatpush2.bf16.msra.mxu0 %v617
    %733 = vmatprep.subr.bf16.mxu0 %v614
    %734 = vmatpush2.bf16.msra.mxu0 %v613
    %735 = vmatprep.subr.bf16.mxu0 %v610
    %736 = vmatpush2.bf16.msra.mxu0 %v609
    %737 = vmatprep.mubr.bf16.mxu0 %v298
    %738 = vmatmul.mubr.bf16.gmra.mxu0 %v297
    %v739 = vpop.f32.mrf.mxu0
    %v740 = vadd.f32 %v368, %v739
    %v741 = vpop.f32.mrf.mxu0
    %v742 = vadd.f32 %v372, %v741
    %v743 = vpop.f32.mrf.mxu0
    %v744 = vadd.f32 %v368, %v743
    %v745 = vpop.f32.mrf.mxu0
    %v746 = vadd.f32 %v372, %v745
    %747 = vdwg.mxu0
    %748 = vmatprep.subr.bf16.mxu0 %v608
    %749 = vmatpush1.bf16.msra.mxu0 %v607
    %750 = vmatprep.subr.bf16.mxu0 %v604
    %751 = vmatpush1.bf16.msra.mxu0 %v603
    %752 = vmatprep.subr.bf16.mxu0 %v600
    %753 = vmatpush1.bf16.msra.mxu0 %v599
    %754 = vmatprep.subr.bf16.mxu0 %v596
    %755 = vmatpush1.bf16.msra.mxu0 %v595
    %756 = vmatprep.subr.bf16.mxu0 %v592
    %757 = vmatpush1.bf16.msra.mxu0 %v591
    %758 = vmatprep.subr.bf16.mxu0 %v588
    %759 = vmatpush1.bf16.msra.mxu0 %v587
    %760 = vmatprep.subr.bf16.mxu0 %v584
    %761 = vmatpush1.bf16.msra.mxu0 %v583
    %762 = vmatprep.subr.bf16.mxu0 %v580
    %763 = vmatpush1.bf16.msra.mxu0 %v579
    %764 = vmatprep.subr.bf16.mxu0 %v640
    %765 = vmatpush2.bf16.msra.mxu0 %v639
    %766 = vmatprep.subr.bf16.mxu0 %v636
    %767 = vmatpush2.bf16.msra.mxu0 %v635
    %768 = vmatprep.subr.bf16.mxu0 %v632
    %769 = vmatpush2.bf16.msra.mxu0 %v631
    %770 = vmatprep.subr.bf16.mxu0 %v628
    %771 = vmatpush2.bf16.msra.mxu0 %v627
    %772 = vmatprep.subr.bf16.mxu0 %v624
    %773 = vmatpush2.bf16.msra.mxu0 %v623
    %774 = vmatprep.subr.bf16.mxu0 %v620
    %775 = vmatpush2.bf16.msra.mxu0 %v619
    %776 = vmatprep.subr.bf16.mxu0 %v616
    %777 = vmatpush2.bf16.msra.mxu0 %v615
    %778 = vmatprep.subr.bf16.mxu0 %v612
    %779 = vmatpush2.bf16.msra.mxu0 %v611
    %780 = vmatprep.mubr.bf16.mxu0 %v298
    %781 = vmatmul.mubr.bf16.gmra.mxu0 %v297
    %v782 = vpop.f32.mrf.mxu0
    %v783 = vadd.f32 %v376, %v782
    %v784 = vpop.f32.mrf.mxu0
    %v785 = vadd.f32 %v380, %v784
    %v786 = vpop.f32.mrf.mxu0
    %v787 = vadd.f32 %v376, %v786
    %v788 = vpop.f32.mrf.mxu0
    %v789 = vadd.f32 %v380, %v788
    %790 = vdwg.mxu0
    %v791 = vtanh.pop %v740
    %v792 = vtanh.pop %v742
    %v793 = vtanh.pop %v783
    %v794 = vtanh.pop %v785
    %v795 = vtanh.pop %v744
    %v796 = vtanh.pop %v746
    %v797 = vtanh.pop %v787
    %v798 = vtanh.pop %v789
    %v799 = vpack.c.bf16 %v795, %v791
    %v800 = vpack.c.bf16 %v796, %v792
    %v801 = vpack.c.bf16 %v797, %v793
    %v802 = vpack.c.bf16 %v798, %v794
    %v803 = vld [vmem:[#allocation7] sm:$0xf]
    %v804 = vld [vmem:[#allocation7 + $0x4] sm:$0xf]
    %v805 = vld [vmem:[#allocation7 + $0x8] sm:$0xf]
    %v806 = vld [vmem:[#allocation7 + $0xc] sm:$0xf]
    %v807 = vld [vmem:[#allocation7 + $0x10] sm:$0xf]
    %v808 = vld [vmem:[#allocation7 + $0x14] sm:$0xf]
    %v809 = vld [vmem:[#allocation7 + $0x18] sm:$0xf]
    %v810 = vld [vmem:[#allocation7 + $0x1c] sm:$0xf]
    %v811 = vld [vmem:[#allocation7 + $0x20] sm:$0xf]
    %v812 = vld [vmem:[#allocation7 + $0x24] sm:$0xf]
    %v813 = vld [vmem:[#allocation7 + $0x28] sm:$0xf]
    %v814 = vld [vmem:[#allocation7 + $0x2c] sm:$0xf]
    %v815 = vld [vmem:[#allocation7 + $0x30] sm:$0xf]
    %v816 = vld [vmem:[#allocation7 + $0x34] sm:$0xf]
    %v817 = vld [vmem:[#allocation7 + $0x38] sm:$0xf]
    %v818 = vld [vmem:[#allocation7 + $0x3c] sm:$0xf]
    %v819 = vld [vmem:[#allocation7 + $0x40] sm:$0xf]
    %v820 = vld [vmem:[#allocation7 + $0x44] sm:$0xf]
    %v821 = vld [vmem:[#allocation7 + $0x48] sm:$0xf]
    %v822 = vld [vmem:[#allocation7 + $0x4c] sm:$0xf]
    %v823 = vld [vmem:[#allocation7 + $0x50] sm:$0xf]
    %v824 = vld [vmem:[#allocation7 + $0x54] sm:$0xf]
    %v825 = vld [vmem:[#allocation7 + $0x58] sm:$0xf]
    %v826 = vld [vmem:[#allocation7 + $0x5c] sm:$0xf]
    %v827 = vld [vmem:[#allocation7 + $0x60] sm:$0xf]
    %v828 = vld [vmem:[#allocation7 + $0x64] sm:$0xf]
    %v829 = vld [vmem:[#allocation7 + $0x68] sm:$0xf]
    %v830 = vld [vmem:[#allocation7 + $0x6c] sm:$0xf]
    %v831 = vld [vmem:[#allocation7 + $0x70] sm:$0xf]
    %v832 = vld [vmem:[#allocation7 + $0x74] sm:$0xf]
    %v833 = vld [vmem:[#allocation7 + $0x78] sm:$0xf]
    %v834 = vld [vmem:[#allocation7 + $0x7c] sm:$0xf]
    %v835 = vld [vmem:[#allocation7 + $0x80] sm:$0xf]
    %v836 = vld [vmem:[#allocation7 + $0x84] sm:$0xf]
    %v837 = vld [vmem:[#allocation7 + $0x88] sm:$0xf]
    %v838 = vld [vmem:[#allocation7 + $0x8c] sm:$0xf]
    %v839 = vld [vmem:[#allocation7 + $0x90] sm:$0xf]
    %v840 = vld [vmem:[#allocation7 + $0x94] sm:$0xf]
    %v841 = vld [vmem:[#allocation7 + $0x98] sm:$0xf]
    %v842 = vld [vmem:[#allocation7 + $0x9c] sm:$0xf]
    %v843 = vld [vmem:[#allocation7 + $0xa0] sm:$0xf]
    %v844 = vld [vmem:[#allocation7 + $0xa4] sm:$0xf]
    %v845 = vld [vmem:[#allocation7 + $0xa8] sm:$0xf]
    %v846 = vld [vmem:[#allocation7 + $0xac] sm:$0xf]
    %v847 = vld [vmem:[#allocation7 + $0xb0] sm:$0xf]
    %v848 = vld [vmem:[#allocation7 + $0xb4] sm:$0xf]
    %v849 = vld [vmem:[#allocation7 + $0xb8] sm:$0xf]
    %v850 = vld [vmem:[#allocation7 + $0xbc] sm:$0xf]
    %v851 = vld [vmem:[#allocation7 + $0xc0] sm:$0xf]
    %v852 = vld [vmem:[#allocation7 + $0xc4] sm:$0xf]
    %v853 = vld [vmem:[#allocation7 + $0xc8] sm:$0xf]
    %v854 = vld [vmem:[#allocation7 + $0xcc] sm:$0xf]
    %v855 = vld [vmem:[#allocation7 + $0xd0] sm:$0xf]
    %v856 = vld [vmem:[#allocation7 + $0xd4] sm:$0xf]
    %v857 = vld [vmem:[#allocation7 + $0xd8] sm:$0xf]
    %v858 = vld [vmem:[#allocation7 + $0xdc] sm:$0xf]
    %v859 = vld [vmem:[#allocation7 + $0xe0] sm:$0xf]
    %v860 = vld [vmem:[#allocation7 + $0xe4] sm:$0xf]
    %v861 = vld [vmem:[#allocation7 + $0xe8] sm:$0xf]
    %v862 = vld [vmem:[#allocation7 + $0xec] sm:$0xf]
    %v863 = vld [vmem:[#allocation7 + $0xf0] sm:$0xf]
    %v864 = vld [vmem:[#allocation7 + $0xf4] sm:$0xf]
    %v865 = vld [vmem:[#allocation7 + $0xf8] sm:$0xf]
    %v866 = vld [vmem:[#allocation7 + $0xfc] sm:$0xf]
    %v867 = vld [vmem:[%s8] sm:$0x1]
    %v869 = vlaneseq
    %v870 = vshrl.u32 %v869, 7
    %v871 = vsub.s32 0, %v870
    %v872 = vrot.slane %v867, %v871
    %v938 = vunpack.c.l.b16 %v803
    %v939 = vunpack.c.l.b16 %v804
    %v940 = vunpack.c.l.b16 %v805
    %v941 = vunpack.c.l.b16 %v806
    %v942 = vunpack.c.l.b16 %v807
    %v943 = vunpack.c.l.b16 %v808
    %v944 = vunpack.c.l.b16 %v809
    %v945 = vunpack.c.l.b16 %v810
    %v946 = vunpack.c.l.b16 %v811
    %v947 = vunpack.c.l.b16 %v812
    %v948 = vunpack.c.l.b16 %v813
    %v949 = vunpack.c.l.b16 %v814
    %v950 = vunpack.c.l.b16 %v815
    %v951 = vunpack.c.l.b16 %v816
    %v952 = vunpack.c.l.b16 %v817
    %v953 = vunpack.c.l.b16 %v818
    %v954 = vunpack.c.l.b16 %v819
    %v955 = vunpack.c.l.b16 %v820
    %v956 = vunpack.c.l.b16 %v821
    %v957 = vunpack.c.l.b16 %v822
    %v958 = vunpack.c.l.b16 %v823
    %v959 = vunpack.c.l.b16 %v824
    %v960 = vunpack.c.l.b16 %v825
    %v961 = vunpack.c.l.b16 %v826
    %v962 = vunpack.c.l.b16 %v827
    %v963 = vunpack.c.l.b16 %v828
    %v964 = vunpack.c.l.b16 %v829
    %v965 = vunpack.c.l.b16 %v830
    %v966 = vunpack.c.l.b16 %v831
    %v967 = vunpack.c.l.b16 %v832
    %v968 = vunpack.c.l.b16 %v833
    %v969 = vunpack.c.l.b16 %v834
    %v970 = vunpack.c.l.b16 %v835
    %v971 = vunpack.c.l.b16 %v836
    %v972 = vunpack.c.l.b16 %v837
    %v973 = vunpack.c.l.b16 %v838
    %v974 = vunpack.c.l.b16 %v839
    %v975 = vunpack.c.l.b16 %v840
    %v976 = vunpack.c.l.b16 %v841
    %v977 = vunpack.c.l.b16 %v842
    %v978 = vunpack.c.l.b16 %v843
    %v979 = vunpack.c.l.b16 %v844
    %v980 = vunpack.c.l.b16 %v845
    %v981 = vunpack.c.l.b16 %v846
    %v982 = vunpack.c.l.b16 %v847
    %v983 = vunpack.c.l.b16 %v848
    %v984 = vunpack.c.l.b16 %v849
    %v985 = vunpack.c.l.b16 %v850
    %v986 = vunpack.c.l.b16 %v851
    %v987 = vunpack.c.l.b16 %v852
    %v988 = vunpack.c.l.b16 %v853
    %v989 = vunpack.c.l.b16 %v854
    %v990 = vunpack.c.l.b16 %v855
    %v991 = vunpack.c.l.b16 %v856
    %v992 = vunpack.c.l.b16 %v857
    %v993 = vunpack.c.l.b16 %v858
    %v994 = vunpack.c.l.b16 %v859
    %v995 = vunpack.c.l.b16 %v860
    %v996 = vunpack.c.l.b16 %v861
    %v997 = vunpack.c.l.b16 %v862
    %v998 = vunpack.c.l.b16 %v863
    %v999 = vunpack.c.l.b16 %v864
    %v1000 = vunpack.c.l.b16 %v865
    %v1001 = vunpack.c.l.b16 %v866
    %v1002 = vpack.c.b16 %v939, %v938
    %v1003 = vpack.c.b16 %v941, %v940
    %v1004 = vpack.c.b16 %v943, %v942
    %v1005 = vpack.c.b16 %v945, %v944
    %v1006 = vpack.c.b16 %v947, %v946
    %v1007 = vpack.c.b16 %v949, %v948
    %v1008 = vpack.c.b16 %v951, %v950
    %v1009 = vpack.c.b16 %v953, %v952
    %v1010 = vpack.c.b16 %v955, %v954
    %v1011 = vpack.c.b16 %v957, %v956
    %v1012 = vpack.c.b16 %v959, %v958
    %v1013 = vpack.c.b16 %v961, %v960
    %v1014 = vpack.c.b16 %v963, %v962
    %v1015 = vpack.c.b16 %v965, %v964
    %v1016 = vpack.c.b16 %v967, %v966
    %v1017 = vpack.c.b16 %v969, %v968
    %v1018 = vpack.c.b16 %v971, %v970
    %v1019 = vpack.c.b16 %v973, %v972
    %v1020 = vpack.c.b16 %v975, %v974
    %v1021 = vpack.c.b16 %v977, %v976
    %v1022 = vpack.c.b16 %v979, %v978
    %v1023 = vpack.c.b16 %v981, %v980
    %v1024 = vpack.c.b16 %v983, %v982
    %v1025 = vpack.c.b16 %v985, %v984
    %v1026 = vpack.c.b16 %v987, %v986
    %v1027 = vpack.c.b16 %v989, %v988
    %v1028 = vpack.c.b16 %v991, %v990
    %v1029 = vpack.c.b16 %v993, %v992
    %v1030 = vpack.c.b16 %v995, %v994
    %v1031 = vpack.c.b16 %v997, %v996
    %v1032 = vpack.c.b16 %v999, %v998
    %v1033 = vpack.c.b16 %v1001, %v1000
    %1066 = vmatprep.subr.bf16.mxu0 0
    %1067 = vmatpush1.bf16.msra.mxu0 %v1009
    %1068 = vmatprep.subr.bf16.mxu0 0
    %1069 = vmatpush1.bf16.msra.mxu0 %v1008
    %1070 = vmatprep.subr.bf16.mxu0 0
    %1071 = vmatpush1.bf16.msra.mxu0 %v1007
    %1072 = vmatprep.subr.bf16.mxu0 0
    %1073 = vmatpush1.bf16.msra.mxu0 %v1006
    %1074 = vmatprep.subr.bf16.mxu0 0
    %1075 = vmatpush1.bf16.msra.mxu0 %v1005
    %1076 = vmatprep.subr.bf16.mxu0 0
    %1077 = vmatpush1.bf16.msra.mxu0 %v1004
    %1078 = vmatprep.subr.bf16.mxu0 0
    %1079 = vmatpush1.bf16.msra.mxu0 %v1003
    %1080 = vmatprep.subr.bf16.mxu0 0
    %1081 = vmatpush1.bf16.msra.mxu0 %v1002
    %1082 = vmatprep.subr.bf16.mxu0 0
    %1083 = vmatpush2.bf16.msra.mxu0 %v1017
    %1084 = vmatprep.subr.bf16.mxu0 0
    %1085 = vmatpush2.bf16.msra.mxu0 %v1016
    %1086 = vmatprep.subr.bf16.mxu0 0
    %1087 = vmatpush2.bf16.msra.mxu0 %v1015
    %1088 = vmatprep.subr.bf16.mxu0 0
    %1089 = vmatpush2.bf16.msra.mxu0 %v1014
    %1090 = vmatprep.subr.bf16.mxu0 0
    %1091 = vmatpush2.bf16.msra.mxu0 %v1013
    %1092 = vmatprep.subr.bf16.mxu0 0
    %1093 = vmatpush2.bf16.msra.mxu0 %v1012
    %1094 = vmatprep.subr.bf16.mxu0 0
    %1095 = vmatpush2.bf16.msra.mxu0 %v1011
    %1096 = vmatprep.subr.bf16.mxu0 0
    %1097 = vmatpush2.bf16.msra.mxu0 %v1010
    %1098 = vmatprep.mubr.bf16.mxu0 %v800
    %1099 = vmatmul.mubr.bf16.gmra.mxu0 %v799
    %v1100 = vpop.f32.mrf.mxu0
    %v1101 = vadd.f32 %v872, %v1100
    %v1102 = vpop.f32.mrf.mxu0
    %v1103 = vpop.f32.mrf.mxu0
    %v1104 = vadd.f32 %v872, %v1103
    %v1105 = vpop.f32.mrf.mxu0
    %1106 = vdwg.mxu0
    %1107 = vmatprep.subr.bf16.mxu0 0
    %1108 = vmatpush1.bf16.msra.mxu0 %v1025
    %1109 = vmatprep.subr.bf16.mxu0 0
    %1110 = vmatpush1.bf16.msra.mxu0 %v1024
    %1111 = vmatprep.subr.bf16.mxu0 0
    %1112 = vmatpush1.bf16.msra.mxu0 %v1023
    %1113 = vmatprep.subr.bf16.mxu0 0
    %1114 = vmatpush1.bf16.msra.mxu0 %v1022
    %1115 = vmatprep.subr.bf16.mxu0 0
    %1116 = vmatpush1.bf16.msra.mxu0 %v1021
    %1117 = vmatprep.subr.bf16.mxu0 0
    %1118 = vmatpush1.bf16.msra.mxu0 %v1020
    %1119 = vmatprep.subr.bf16.mxu0 0
    %1120 = vmatpush1.bf16.msra.mxu0 %v1019
    %1121 = vmatprep.subr.bf16.mxu0 0
    %1122 = vmatpush1.bf16.msra.mxu0 %v1018
    %1123 = vmatprep.subr.bf16.mxu0 0
    %1124 = vmatpush2.bf16.msra.mxu0 %v1033
    %1125 = vmatprep.subr.bf16.mxu0 0
    %1126 = vmatpush2.bf16.msra.mxu0 %v1032
    %1127 = vmatprep.subr.bf16.mxu0 0
    %1128 = vmatpush2.bf16.msra.mxu0 %v1031
    %1129 = vmatprep.subr.bf16.mxu0 0
    %1130 = vmatpush2.bf16.msra.mxu0 %v1030
    %1131 = vmatprep.subr.bf16.mxu0 0
    %1132 = vmatpush2.bf16.msra.mxu0 %v1029
    %1133 = vmatprep.subr.bf16.mxu0 0
    %1134 = vmatpush2.bf16.msra.mxu0 %v1028
    %1135 = vmatprep.subr.bf16.mxu0 0
    %1136 = vmatpush2.bf16.msra.mxu0 %v1027
    %1137 = vmatprep.subr.bf16.mxu0 0
    %1138 = vmatpush2.bf16.msra.mxu0 %v1026
    %1139 = vmatprep.mubr.bf16.mxu0 %v802
    %1140 = vmatmul.mubr.bf16.gmra.mxu0 %v801
    %v1141 = vpop.f32.mrf.mxu0
    %v1142 = vadd.f32 %v1101, %v1141
    %v1143 = vpop.f32.mrf.mxu0
    %v1144 = vpop.f32.mrf.mxu0
    %v1145 = vadd.f32 %v1104, %v1144
    %v1146 = vpop.f32.mrf.mxu0
    %1147 = vdwg.mxu0
    %v1148 = vpack.c.bf16 %v1145, %v1142
    %v1150 = vunpack.c.l.b16 %v1148
    %v1151 = vunpack.c.h.b16 %v1148
    %v1152 = vpack.c.b16 %v1150, %v1150
    %v1153 = vpack.c.b16 %v1151, %v1151
    %1156 = vst [vmem:[#allocation8] sm:$0xf] %v1152
    %1157 = vst [vmem:[#allocation8 + $0x4] sm:$0xf] %v1153
    // Predicated region
    $region50: #{tpu_custom_call.1} parent=1 // pred_check
      _
    $region51: #{tpu_custom_call.1} parent=1 // pred_check_branch
      %1159 = sbr.rel (0) target = $region53
    $region52: #{tpu_custom_call.1} parent=1 // pred_region
      %s1161 = ssub.s32 128, 128
      %1162 = vsyncadd [#allocation4], %s1161
      %s1163 = sshll.u32 [#allocation8], 4
      %s1164 = int_to_ptr.vmem [resolvable:$true] %s1163
      %1169 = dma.vmem_to_hbm [thread:$0]  %s1164, 128, %s9, [#allocation4], 64, 64, 4
    $region53: #{tpu_custom_call.1} parent=1 // pred_fallthru
      _
    // Predicated region
    $region54: #{tpu_custom_call.1} parent=1 // pred_check
      _
    $region55: #{tpu_custom_call.1} parent=1 // pred_check_branch
      %1171 = sbr.rel (0) target = $region57
    $region56: #{tpu_custom_call.1} parent=1 // pred_region
      %1172 = dma.done [#allocation4], 128
    $region57: #{tpu_custom_call.1} parent=1 // pred_fallthru
      _
    %1173 = vsyncpa [#allocation3], 1
    %1174 = vsyncpa [#allocation6], 1
    %1175 = vsyncpa [#allocation4], 1

</llo_original>
